<compile_context>
chip_gen: v5e
topology: v5e:2x2
jax: 0.10.0
libtpu: 0.0.40
codegen_flags: <defaults>
</compile_context>

<pallas_src>
import functools

import jax
import jax.numpy as jnp
from jax.experimental import pallas as pl
from jax.experimental.pallas import tpu as pltpu

EPS = 1e-5


def _basic_block_kernel(x_ref, w1_ref, w2_ref, bc_ref, gb_ref, o_ref, *, H):
    """x_ref : (N*H, W*C) f32 activations (lane-dense).
    w*_ref  : (3*W*Ci, W*Co) bf16 K-stacked banded conv matrices ([dh=1,0,2]).
    bc_ref  : (W*C, W*C) f32 per-channel reduce+broadcast matrix (1/count folded in).
    gb_ref  : (8, W*C) f32 packed [g1; b1; g2; b2; 0...] tiled over w positions."""
    NH, L = x_ref.shape
    x = x_ref[...]                                     # (NH, L) f32

    # Image-row index of every row of the packed layout. Rows whose h-neighbour
    # falls outside the image (conv zero padding / batch boundary) are masked.
    h_idx = jax.lax.broadcasted_iota(jnp.int32, (NH, 1), 0) % H
    mask_up = h_idx >= 1              # row above exists in the same image
    mask_dn = h_idx <= H - 2          # row below exists in the same image
    zero16 = jnp.zeros((), jnp.bfloat16)

    gb = gb_ref[...]
    g1, b1 = gb[0:1, :], gb[1:2, :]
    g2, b2 = gb[2:3, :], gb[3:4, :]

    def conv3x3(a, w_ref):
        # h-shifted taps via XLU roll + edge masks (w shift/padding lives in w_ref).
        # Rolls kept f32 (safe lowering); masked copies + matmul operands are bf16.
        a16 = a.astype(jnp.bfloat16)
        up = jnp.where(mask_up, pltpu.roll(a, 1, 0).astype(jnp.bfloat16), zero16)
        dn = jnp.where(mask_dn, pltpu.roll(a, NH - 1, 0).astype(jnp.bfloat16), zero16)
        a_cat = jnp.concatenate([a16, up, dn], axis=1)           # (NH, 3L)
        # Single K=3L matmul: accumulation of the three taps happens in the MXU.
        return jnp.dot(a_cat, w_ref[...], preferred_element_type=jnp.float32)

    def batchnorm(y, g, b):
        # Fused single-pass BN: per-lane sum & sumsq, then per-channel
        # reduce+broadcast across the w positions with one aligned matmul
        # (1/count is folded into bc_ref, so red[0]=mean, red[1]=E[y^2]).
        s1 = jnp.sum(y, axis=0, keepdims=True)          # (1, L)
        s2 = jnp.sum(y * y, axis=0, keepdims=True)      # (1, L)
        stats = jnp.concatenate(
            [s1, s2, jnp.zeros((6, L), jnp.float32)], axis=0)    # (8, L) aligned
        red = jnp.dot(stats, bc_ref[...], preferred_element_type=jnp.float32)
        mean = red[0:1, :]                              # per-channel, lane-replicated
        var = red[1:2, :] - mean * mean                 # biased (torch train mode)
        # TODO(synk): single-pass E[x^2]-mean^2 is cancellation-prone at large
        # activation magnitudes; switch to two-pass/Welford if reused at scale.
        scale = g * jax.lax.rsqrt(var + EPS)            # EUP rsqrt
        shift = b - mean * scale
        return y * scale + shift

    # out = act0(x); out = bn1(conv1(out)); identity2 = identity + out
    a0 = jnp.clip(x, -1.0, 1.0)                         # Hardtanh
    y1 = batchnorm(conv3x3(a0, w1_ref), g1, b1)
    id2 = x + y1

    # out = act1(identity2); out = bn2(conv2(out)); out += identity2
    a1 = jnp.clip(id2, -1.0, 1.0)                       # Hardtanh
    y2 = batchnorm(conv3x3(a1, w2_ref), g2, b2)

    o_ref[...] = (y2 + id2).astype(o_ref.dtype)


def _band_conv_weight(w_hwio, w_spatial):
    """Fold the w-direction shifts + zero padding of a 3x3 'same' conv into a
    banded matrix per kernel row: returns (KH, W*Ci, W*Co)."""
    KH, KW, Ci, Co = w_hwio.shape
    wi = jnp.arange(w_spatial)[:, None]                 # input w position
    wo = jnp.arange(w_spatial)[None, :]                 # output w position
    dw = wi - wo + (KW // 2)                            # kernel tap index
    valid = ((dw >= 0) & (dw < KW)).astype(w_hwio.dtype)
    dw_c = jnp.clip(dw, 0, KW - 1)

    def per_dh(tap):                                    # tap: (KW, Ci, Co)
        m4 = tap[dw_c] * valid[:, :, None, None]        # (W, W, Ci, Co) = [win, wout, ci, co]
        return jnp.transpose(m4, (0, 2, 1, 3)).reshape(w_spatial * Ci, w_spatial * Co)

    return jnp.stack([per_dh(w_hwio[dh]) for dh in range(KH)], axis=0)


@jax.jit
def basic_block(x_nhwc, w1_hwio, g1, b1, w2_hwio, g2, b2):
    N, H, W, Ci = x_nhwc.shape
    Co = w1_hwio.shape[-1]
    assert Ci == Co, "stride=1 / downsample=None path requires inplanes == planes"
    NH, Lin, Lout = N * H, W * Ci, W * Co

    # Layout plumbing (weights preprocessed once; activations just reshaped).
    x2d = x_nhwc.reshape(NH, Lin)                                   # (N*H, W*C)
    w1s = _band_conv_weight(w1_hwio, W)                             # (3, W*Ci, W*Co)
    w2s = _band_conv_weight(w2_hwio, W)                             # (3, W*Co, W*Co)
    # K-stack in the order matching the kernel's concat [a_mid, a_up, a_dn]:
    w1b = jnp.concatenate([w1s[1], w1s[0], w1s[2]], axis=0).astype(jnp.bfloat16)
    w2b = jnp.concatenate([w2s[1], w2s[0], w2s[2]], axis=0).astype(jnp.bfloat16)
    inv_count = 1.0 / float(N * H * W)                              # exactly representable here
    bc = jnp.tile(jnp.eye(Co, dtype=jnp.float32), (W, W)) * inv_count  # (W*Co, W*Co)

    def lane(v):                                                    # tile per-channel -> per-lane
        return jnp.tile(v.astype(jnp.float32), W)
    gb = jnp.concatenate(
        [jnp.stack([lane(g1), lane(b1), lane(g2), lane(b2)], axis=0),
         jnp.zeros((4, Lout), jnp.float32)], axis=0)                # (8, W*Co) packed BN params

    kernel = functools.partial(_basic_block_kernel, H=H)

    def full(shape):
        return pl.BlockSpec(shape, lambda i: (0,) * len(shape))

    out2d = pl.pallas_call(
        kernel,
        grid=(1,),                    # whole block fits in VMEM at these sizes
        out_shape=jax.ShapeDtypeStruct((NH, Lout), x_nhwc.dtype),
        in_specs=[
            full((NH, Lin)),
            full((3 * Lin, Lout)), full((3 * Lout, Lout)),
            full((Lout, Lout)),
            full((8, Lout)),
        ],
        out_specs=full((NH, Lout)),
        input_output_aliases={0: 0},   # donate x2d buffer to the output
        compiler_params=pltpu.CompilerParams(
            dimension_semantics=("arbitrary",)),
    )(x2d, w1b, w2b, bc, gb)

    return out2d.reshape(N, H, W, Co)


def ref_basic_block(x_nhwc, w1, g1, b1, w2, g2, b2):
    """Pure-JAX reference (same math as the PyTorch module in train mode).
    Conv operands are rounded to bf16 (with f32 accumulation) to match the
    kernel's MXU precision; everything else stays f32."""
    def conv(a, w):
        a16 = a.astype(jnp.bfloat16).astype(jnp.float32)
        w16 = w.astype(jnp.bfloat16).astype(jnp.float32)
        return jax.lax.conv_general_dilated(
            a16, w16, window_strides=(1, 1), padding="SAME",
            dimension_numbers=("NHWC", "HWIO", "NHWC"))

    def bn(y, g, b):
        mu = jnp.mean(y, axis=(0, 1, 2), keepdims=True)
        var = jnp.mean((y - mu) ** 2, axis=(0, 1, 2), keepdims=True)
        return ((y - mu) / jnp.sqrt(var + EPS)
                * g.reshape(1, 1, 1, -1) + b.reshape(1, 1, 1, -1))

    a0 = jnp.clip(x_nhwc, -1.0, 1.0)
    y1 = bn(conv(a0, w1), g1, b1)
    id2 = x_nhwc + y1
    a1 = jnp.clip(id2, -1.0, 1.0)
    y2 = bn(conv(a1, w2), g2, b2)
    return y2 + id2


if __name__ == "__main__":
    key = jax.random.PRNGKey(0)
    N, C, Hs, Ws = 2, 8, 16, 16          # inplanes = planes = 8, stride = 1; W*C = 128 lanes
    kx, kw1, kw2, kg1, kb1, kg2, kb2 = jax.random.split(key, 7)

    # PyTorch-layout tensors (NCHW input, OIHW conv weights), deterministic init.
    x_nchw = jax.random.normal(kx, (N, C, Hs, Ws), jnp.float32)
    w1_oihw = jax.random.normal(kw1, (C, C, 3, 3), jnp.float32) * 0.2
    w2_oihw = jax.random.normal(kw2, (C, C, 3, 3), jnp.float32) * 0.2
    g1 = 1.0 + 0.1 * jax.random.normal(kg1, (C,), jnp.float32)   # bn1.weight
    b1 = 0.1 * jax.random.normal(kb1, (C,), jnp.float32)         # bn1.bias
    g2 = 1.0 + 0.1 * jax.random.normal(kg2, (C,), jnp.float32)   # bn2.weight
    b2 = 0.1 * jax.random.normal(kb2, (C,), jnp.float32)         # bn2.bias

    # Convert to kernel layout: NHWC activations, HWIO weights.
    x_nhwc = jnp.transpose(x_nchw, (0, 2, 3, 1))
    w1 = jnp.transpose(w1_oihw, (2, 3, 1, 0))
    w2 = jnp.transpose(w2_oihw, (2, 3, 1, 0))

    out = basic_block(x_nhwc, w1, g1, b1, w2, g2, b2)
    out = jax.block_until_ready(out)

    ref = ref_basic_block(x_nhwc, w1, g1, b1, w2, g2, b2)
    max_err = float(jnp.max(jnp.abs(out - ref)))
    # bf16 MXU operands (f32 accumulation) => slightly looser tolerance than pure f32.
    assert jnp.allclose(out, ref, atol=5e-3, rtol=5e-3), f"max_err={max_err}"

    print("KERNEL_OK")
</pallas_src>

<mosaic_0001>
module attributes {stable_mosaic.version = 11 : i64} {
  func.func @_basic_block_kernel(%arg0: i32, %arg1: memref<32x128xf32, #tpu.memory_space<vmem>>, %arg2: memref<384x128xbf16, #tpu.memory_space<vmem>>, %arg3: memref<384x128xbf16, #tpu.memory_space<vmem>>, %arg4: memref<128x128xf32, #tpu.memory_space<vmem>>, %arg5: memref<8x128xf32, #tpu.memory_space<vmem>>, %arg6: memref<32x128xf32, #tpu.memory_space<vmem>>) attributes {dimension_semantics = [#tpu.dimension_semantics<arbitrary>], iteration_bounds = array<i64: 1>, scalar_prefetch = 0 : i64, scratch_operands = 0 : i64, tpu.core_type = #tpu.core_type<tc>, window_params = [{pipeline_mode = #tpu.pipeline_mode<synchronous>, transform_indices = @transform_0, window_bounds = array<i64: 32, 128>}, {pipeline_mode = #tpu.pipeline_mode<synchronous>, transform_indices = @transform_1, window_bounds = array<i64: 384, 128>}, {pipeline_mode = #tpu.pipeline_mode<synchronous>, transform_indices = @transform_2, window_bounds = array<i64: 384, 128>}, {pipeline_mode = #tpu.pipeline_mode<synchronous>, transform_indices = @transform_3, window_bounds = array<i64: 128, 128>}, {pipeline_mode = #tpu.pipeline_mode<synchronous>, transform_indices = @transform_4, window_bounds = array<i64: 8, 128>}, {pipeline_mode = #tpu.pipeline_mode<synchronous>, transform_indices = @transform_5, window_bounds = array<i64: 32, 128>}]} {
    %c0 = arith.constant 0 : index
    %c0_0 = arith.constant 0 : index
    %0 = vector.load %arg1[%c0, %c0_0] : memref<32x128xf32, #tpu.memory_space<vmem>>, vector<32x128xf32>
    %1 = tpu.iota {dimensions = array<i32: 0>} : vector<32x1xi32>
    %c16_i32 = arith.constant 16 : i32
    %c0_i32 = arith.constant 0 : i32
    %2 = arith.cmpi eq, %c16_i32, %c0_i32 : i32
    %c1_i32 = arith.constant 1 : i32
    %3 = arith.select %2, %c1_i32, %c16_i32 : i32
    %4 = vector.broadcast %3 : i32 to vector<32x1xi32>
    %5 = arith.remsi %1, %4 : vector<32x1xi32>
    %c0_i32_1 = arith.constant 0 : i32
    %6 = vector.broadcast %c0_i32_1 : i32 to vector<32x1xi32>
    %7 = arith.cmpi ne, %5, %6 : vector<32x1xi32>
    %c0_i32_2 = arith.constant 0 : i32
    %8 = vector.broadcast %c0_i32_2 : i32 to vector<32x1xi32>
    %9 = arith.cmpi slt, %5, %8 : vector<32x1xi32>
    %c0_i32_3 = arith.constant 0 : i32
    %10 = arith.cmpi slt, %3, %c0_i32_3 : i32
    %11 = vector.broadcast %10 : i1 to vector<32x1xi1>
    %12 = vector.broadcast %11 : vector<32x1xi1> to vector<32x1xi1>
    %13 = arith.xori %9, %12 : vector<32x1xi1>
    %14 = arith.andi %13, %7 : vector<32x1xi1>
    %15 = vector.broadcast %3 : i32 to vector<32x1xi32>
    %16 = arith.addi %5, %15 : vector<32x1xi32>
    %17 = arith.select %14, %16, %5 : vector<32x1xi1>, vector<32x1xi32>
    %c1_i32_4 = arith.constant 1 : i32
    %18 = vector.broadcast %c1_i32_4 : i32 to vector<32x1xi32>
    %19 = arith.cmpi sge, %17, %18 : vector<32x1xi32>
    %c14_i32 = arith.constant 14 : i32
    %20 = vector.broadcast %c14_i32 : i32 to vector<32x1xi32>
    %21 = arith.cmpi sle, %17, %20 : vector<32x1xi32>
    %c0_5 = arith.constant 0 : index
    %c0_6 = arith.constant 0 : index
    %22 = vector.load %arg5[%c0_5, %c0_6] : memref<8x128xf32, #tpu.memory_space<vmem>>, vector<8x128xf32>
    %23 = vector.extract_strided_slice %22 {offsets = [0, 0], sizes = [1, 128], strides = [1, 1]} : vector<8x128xf32> to vector<1x128xf32>
    %24 = vector.extract_strided_slice %22 {offsets = [1, 0], sizes = [1, 128], strides = [1, 1]} : vector<8x128xf32> to vector<1x128xf32>
    %25 = vector.extract_strided_slice %22 {offsets = [2, 0], sizes = [1, 128], strides = [1, 1]} : vector<8x128xf32> to vector<1x128xf32>
    %26 = vector.extract_strided_slice %22 {offsets = [3, 0], sizes = [1, 128], strides = [1, 1]} : vector<8x128xf32> to vector<1x128xf32>
    %cst = arith.constant -1.000000e+00 : f32
    %cst_7 = arith.constant 1.000000e+00 : f32
    %27 = vector.broadcast %cst : f32 to vector<32x128xf32>
    %28 = arith.maximumf %27, %0 : vector<32x128xf32>
    %29 = vector.broadcast %cst_7 : f32 to vector<32x128xf32>
    %30 = arith.minimumf %29, %28 : vector<32x128xf32>
    %31 = arith.truncf %30 : vector<32x128xf32> to vector<32x128xbf16>
    %c1_i32_8 = arith.constant 1 : i32
    %32 = tpu.dynamic_rotate %30 by %c1_i32_8 dim 0 : vector<32x128xf32>, i32 -> vector<32x128xf32>
    %33 = arith.truncf %32 : vector<32x128xf32> to vector<32x128xbf16>
    %cst_9 = arith.constant 0.000000e+00 : bf16
    %34 = vector.shape_cast %19 : vector<32x1xi1> to vector<32x1xi1>
    %35 = vector.broadcast %34 : vector<32x1xi1> to vector<32x128xi1>
    %36 = vector.broadcast %cst_9 : bf16 to vector<32x128xbf16>
    %37 = arith.select %35, %33, %36 : vector<32x128xi1>, vector<32x128xbf16>
    %c31_i32 = arith.constant 31 : i32
    %38 = tpu.dynamic_rotate %30 by %c31_i32 dim 0 : vector<32x128xf32>, i32 -> vector<32x128xf32>
    %39 = arith.truncf %38 : vector<32x128xf32> to vector<32x128xbf16>
    %cst_10 = arith.constant 0.000000e+00 : bf16
    %40 = vector.shape_cast %21 : vector<32x1xi1> to vector<32x1xi1>
    %41 = vector.broadcast %40 : vector<32x1xi1> to vector<32x128xi1>
    %42 = vector.broadcast %cst_10 : bf16 to vector<32x128xbf16>
    %43 = arith.select %41, %39, %42 : vector<32x128xi1>, vector<32x128xbf16>
    %44 = tpu.concatenate %31, %37, %43 in 1 : vector<32x128xbf16>, vector<32x128xbf16>, vector<32x128xbf16> -> vector<32x384xbf16>
    %c0_11 = arith.constant 0 : index
    %c0_12 = arith.constant 0 : index
    %45 = vector.load %arg2[%c0_11, %c0_12] : memref<384x128xbf16, #tpu.memory_space<vmem>>, vector<384x128xbf16>
    %cst_13 = arith.constant dense<0.000000e+00> : vector<32x128xf32>
    %46 = tpu.matmul %44, %45, %cst_13 {dimension_numbers = #tpu.dot_dimension_numbers<[1], [0], [0], [1], [0, 0, 1, 1], [], []>} : vector<32x384xbf16>, vector<384x128xbf16>, vector<32x128xf32> -> vector<32x128xf32>
    %cst_14 = arith.constant dense<0.000000e+00> : vector<128xf32>
    %47 = vector.multi_reduction <add>, %46, %cst_14 [0] : vector<32x128xf32> to vector<128xf32>
    %48 = vector.shape_cast %47 : vector<128xf32> to vector<1x128xf32>
    %49 = arith.mulf %46, %46 : vector<32x128xf32>
    %cst_15 = arith.constant dense<0.000000e+00> : vector<128xf32>
    %50 = vector.multi_reduction <add>, %49, %cst_15 [0] : vector<32x128xf32> to vector<128xf32>
    %51 = vector.shape_cast %50 : vector<128xf32> to vector<1x128xf32>
    %cst_16 = arith.constant 0.000000e+00 : f32
    %52 = vector.broadcast %cst_16 : f32 to vector<6x128xf32>
    %53 = tpu.concatenate %48, %51, %52 in 0 : vector<1x128xf32>, vector<1x128xf32>, vector<6x128xf32> -> vector<8x128xf32>
    %c0_17 = arith.constant 0 : index
    %c0_18 = arith.constant 0 : index
    %54 = vector.load %arg4[%c0_17, %c0_18] : memref<128x128xf32, #tpu.memory_space<vmem>>, vector<128x128xf32>
    %cst_19 = arith.constant dense<0.000000e+00> : vector<8x128xf32>
    %55 = tpu.matmul %53, %54, %cst_19 {dimension_numbers = #tpu.dot_dimension_numbers<[1], [0], [0], [1], [0, 0, 1, 1], [], []>} : vector<8x128xf32>, vector<128x128xf32>, vector<8x128xf32> -> vector<8x128xf32>
    %56 = vector.extract_strided_slice %55 {offsets = [0, 0], sizes = [1, 128], strides = [1, 1]} : vector<8x128xf32> to vector<1x128xf32>
    %57 = vector.extract_strided_slice %55 {offsets = [1, 0], sizes = [1, 128], strides = [1, 1]} : vector<8x128xf32> to vector<1x128xf32>
    %58 = arith.mulf %56, %56 : vector<1x128xf32>
    %59 = arith.subf %57, %58 : vector<1x128xf32>
    %cst_20 = arith.constant 9.99999974E-6 : f32
    %60 = vector.broadcast %cst_20 : f32 to vector<1x128xf32>
    %61 = arith.addf %59, %60 : vector<1x128xf32>
    %62 = math.rsqrt %61 : vector<1x128xf32>
    %63 = arith.mulf %23, %62 : vector<1x128xf32>
    %64 = arith.mulf %56, %63 : vector<1x128xf32>
    %65 = arith.subf %24, %64 : vector<1x128xf32>
    %66 = vector.broadcast %63 : vector<1x128xf32> to vector<32x128xf32>
    %67 = arith.mulf %46, %66 : vector<32x128xf32>
    %68 = vector.broadcast %65 : vector<1x128xf32> to vector<32x128xf32>
    %69 = arith.addf %67, %68 : vector<32x128xf32>
    %70 = arith.addf %0, %69 : vector<32x128xf32>
    %cst_21 = arith.constant -1.000000e+00 : f32
    %cst_22 = arith.constant 1.000000e+00 : f32
    %71 = vector.broadcast %cst_21 : f32 to vector<32x128xf32>
    %72 = arith.maximumf %71, %70 : vector<32x128xf32>
    %73 = vector.broadcast %cst_22 : f32 to vector<32x128xf32>
    %74 = arith.minimumf %73, %72 : vector<32x128xf32>
    %75 = arith.truncf %74 : vector<32x128xf32> to vector<32x128xbf16>
    %c1_i32_23 = arith.constant 1 : i32
    %76 = tpu.dynamic_rotate %74 by %c1_i32_23 dim 0 : vector<32x128xf32>, i32 -> vector<32x128xf32>
    %77 = arith.truncf %76 : vector<32x128xf32> to vector<32x128xbf16>
    %cst_24 = arith.constant 0.000000e+00 : bf16
    %78 = vector.shape_cast %19 : vector<32x1xi1> to vector<32x1xi1>
    %79 = vector.broadcast %78 : vector<32x1xi1> to vector<32x128xi1>
    %80 = vector.broadcast %cst_24 : bf16 to vector<32x128xbf16>
    %81 = arith.select %79, %77, %80 : vector<32x128xi1>, vector<32x128xbf16>
    %c31_i32_25 = arith.constant 31 : i32
    %82 = tpu.dynamic_rotate %74 by %c31_i32_25 dim 0 : vector<32x128xf32>, i32 -> vector<32x128xf32>
    %83 = arith.truncf %82 : vector<32x128xf32> to vector<32x128xbf16>
    %cst_26 = arith.constant 0.000000e+00 : bf16
    %84 = vector.shape_cast %21 : vector<32x1xi1> to vector<32x1xi1>
    %85 = vector.broadcast %84 : vector<32x1xi1> to vector<32x128xi1>
    %86 = vector.broadcast %cst_26 : bf16 to vector<32x128xbf16>
    %87 = arith.select %85, %83, %86 : vector<32x128xi1>, vector<32x128xbf16>
    %88 = tpu.concatenate %75, %81, %87 in 1 : vector<32x128xbf16>, vector<32x128xbf16>, vector<32x128xbf16> -> vector<32x384xbf16>
    %c0_27 = arith.constant 0 : index
    %c0_28 = arith.constant 0 : index
    %89 = vector.load %arg3[%c0_27, %c0_28] : memref<384x128xbf16, #tpu.memory_space<vmem>>, vector<384x128xbf16>
    %cst_29 = arith.constant dense<0.000000e+00> : vector<32x128xf32>
    %90 = tpu.matmul %88, %89, %cst_29 {dimension_numbers = #tpu.dot_dimension_numbers<[1], [0], [0], [1], [0, 0, 1, 1], [], []>} : vector<32x384xbf16>, vector<384x128xbf16>, vector<32x128xf32> -> vector<32x128xf32>
    %cst_30 = arith.constant dense<0.000000e+00> : vector<128xf32>
    %91 = vector.multi_reduction <add>, %90, %cst_30 [0] : vector<32x128xf32> to vector<128xf32>
    %92 = vector.shape_cast %91 : vector<128xf32> to vector<1x128xf32>
    %93 = arith.mulf %90, %90 : vector<32x128xf32>
    %cst_31 = arith.constant dense<0.000000e+00> : vector<128xf32>
    %94 = vector.multi_reduction <add>, %93, %cst_31 [0] : vector<32x128xf32> to vector<128xf32>
    %95 = vector.shape_cast %94 : vector<128xf32> to vector<1x128xf32>
    %cst_32 = arith.constant 0.000000e+00 : f32
    %96 = vector.broadcast %cst_32 : f32 to vector<6x128xf32>
    %97 = tpu.concatenate %92, %95, %96 in 0 : vector<1x128xf32>, vector<1x128xf32>, vector<6x128xf32> -> vector<8x128xf32>
    %c0_33 = arith.constant 0 : index
    %c0_34 = arith.constant 0 : index
    %98 = vector.load %arg4[%c0_33, %c0_34] : memref<128x128xf32, #tpu.memory_space<vmem>>, vector<128x128xf32>
    %cst_35 = arith.constant dense<0.000000e+00> : vector<8x128xf32>
    %99 = tpu.matmul %97, %98, %cst_35 {dimension_numbers = #tpu.dot_dimension_numbers<[1], [0], [0], [1], [0, 0, 1, 1], [], []>} : vector<8x128xf32>, vector<128x128xf32>, vector<8x128xf32> -> vector<8x128xf32>
    %100 = vector.extract_strided_slice %99 {offsets = [0, 0], sizes = [1, 128], strides = [1, 1]} : vector<8x128xf32> to vector<1x128xf32>
    %101 = vector.extract_strided_slice %99 {offsets = [1, 0], sizes = [1, 128], strides = [1, 1]} : vector<8x128xf32> to vector<1x128xf32>
    %102 = arith.mulf %100, %100 : vector<1x128xf32>
    %103 = arith.subf %101, %102 : vector<1x128xf32>
    %cst_36 = arith.constant 9.99999974E-6 : f32
    %104 = vector.broadcast %cst_36 : f32 to vector<1x128xf32>
    %105 = arith.addf %103, %104 : vector<1x128xf32>
    %106 = math.rsqrt %105 : vector<1x128xf32>
    %107 = arith.mulf %25, %106 : vector<1x128xf32>
    %108 = arith.mulf %100, %107 : vector<1x128xf32>
    %109 = arith.subf %26, %108 : vector<1x128xf32>
    %110 = vector.broadcast %107 : vector<1x128xf32> to vector<32x128xf32>
    %111 = arith.mulf %90, %110 : vector<32x128xf32>
    %112 = vector.broadcast %109 : vector<1x128xf32> to vector<32x128xf32>
    %113 = arith.addf %111, %112 : vector<32x128xf32>
    %114 = arith.addf %113, %70 : vector<32x128xf32>
    %c0_37 = arith.constant 0 : index
    %c0_38 = arith.constant 0 : index
    %115 = vector.load %arg6[%c0_37, %c0_38] : memref<32x128xf32, #tpu.memory_space<vmem>>, vector<32x128xf32>
    tpu.vector_store %arg6[%c0_37, %c0_38], %114 {strides = array<i32>} : memref<32x128xf32, #tpu.memory_space<vmem>>, vector<32x128xf32>,
    return
  }
  func.func @transform_0(%arg0: i32) -> (i32, i32) {
    %c0_i32 = arith.constant 0 : i32
    %c0_i32_0 = arith.constant 0 : i32
    %c0_i32_1 = arith.constant 0 : i32
    return %c0_i32, %c0_i32_0 : i32, i32
  }
  func.func @transform_1(%arg0: i32) -> (i32, i32) {
    %c0_i32 = arith.constant 0 : i32
    %c0_i32_0 = arith.constant 0 : i32
    %c0_i32_1 = arith.constant 0 : i32
    return %c0_i32, %c0_i32_0 : i32, i32
  }
  func.func @transform_2(%arg0: i32) -> (i32, i32) {
    %c0_i32 = arith.constant 0 : i32
    %c0_i32_0 = arith.constant 0 : i32
    %c0_i32_1 = arith.constant 0 : i32
    return %c0_i32, %c0_i32_0 : i32, i32
  }
  func.func @transform_3(%arg0: i32) -> (i32, i32) {
    %c0_i32 = arith.constant 0 : i32
    %c0_i32_0 = arith.constant 0 : i32
    %c0_i32_1 = arith.constant 0 : i32
    return %c0_i32, %c0_i32_0 : i32, i32
  }
  func.func @transform_4(%arg0: i32) -> (i32, i32) {
    %c0_i32 = arith.constant 0 : i32
    %c0_i32_0 = arith.constant 0 : i32
    %c0_i32_1 = arith.constant 0 : i32
    return %c0_i32, %c0_i32_0 : i32, i32
  }
  func.func @transform_5(%arg0: i32) -> (i32, i32) {
    %c0_i32 = arith.constant 0 : i32
    %c0_i32_0 = arith.constant 0 : i32
    %c0_i32_1 = arith.constant 0 : i32
    return %c0_i32, %c0_i32_0 : i32, i32
  }
}

</mosaic_0001>

<llo_original>
// kernel: tile.33
$region0: #{tile.33}
  #allocation0 [shape = 's32[1]{0}', space=sflag, size = 0x4, scoped, tag = 'scoped memory for tile.33']
  %s0 = inlined_call_operand.vmem [shape: f32[8], index: 0, kind: input, shape index: {}]
  %s1 = inlined_call_operand.vmem [shape: f32[16,8], index: 1, kind: output, shape index: {}]
  // Predicated region
  $region2: #{tile.33} parent=0 // pred_check
    _
  $region3: #{tile.33} parent=0 // pred_check_branch
    %3 = sbr.rel (0) target = $region5
  $region4: #{tile.33} parent=0 // pred_region
    _
  $region5: #{tile.33} parent=0 // pred_fallthru
    _
  %v4 = vld [vmem:[%s0] ss:$0 sm:$0xff]
  %5 = vst [vmem:[%s1] sm:$0xff] %v4
  %s6 = scalar_lea.vmem %s1, 8
  %7 = vst [vmem:[%s6] sm:$0xff] %v4

// kernel: tile.46
$region0: #{tile.46}
  %s0 = inlined_call_operand.vmem [shape: f32[16,8], index: 0, kind: input, shape index: {}]
  %s1 = inlined_call_operand.vmem [shape: f32[1,128], index: 1, kind: output, shape index: {}]
  $region1: #{tile.46} parent=0
    #allocation0 [shape = 'u8[4096]{0}', space=vmem, size = 0x1000, scoped, tag = 'scoped mem for output reshape']
    %v2 = vld [vmem:[%s0] sm:$0x1]
    %vm3 = vcmask 64512
    %4 = vst.msk [vmem:[#allocation0] sm:$0x1] %vm3, %v2
    %s5 = scalar_lea.vmem %s0, 15
    %v6 = vld [vmem:[%s5] sm:$0x1]
    %7 = vrot.lane.b32.xlu0 %v6, 120
    %v8 = vpop.permute.xlu0 %7
    %vm9 = vcmask 1048512
    %10 = vst.msk [vmem:[#allocation0] sm:$0x1] %vm9, %v8
    %s11 = scalar_lea.vmem %s0, 14
    %v12 = vld [vmem:[%s11] sm:$0x1]
    %13 = vrot.lane.b32.xlu0 %v12, 112
    %v14 = vpop.permute.xlu0 %13
    %vm15 = vcmask 982912
    %16 = vst.msk [vmem:[#allocation0] sm:$0x1] %vm15, %v14
    %s17 = scalar_lea.vmem %s0, 13
    %v18 = vld [vmem:[%s17] sm:$0x1]
    %19 = vrot.lane.b32.xlu0 %v18, 104
    %v20 = vpop.permute.xlu0 %19
    %vm21 = vcmask 917312
    %22 = vst.msk [vmem:[#allocation0] sm:$0x1] %vm21, %v20
    %s23 = scalar_lea.vmem %s0, 12
    %v24 = vld [vmem:[%s23] sm:$0x1]
    %25 = vrot.lane.b32.xlu0 %v24, 96
    %v26 = vpop.permute.xlu0 %25
    %vm27 = vcmask 851712
    %28 = vst.msk [vmem:[#allocation0] sm:$0x1] %vm27, %v26
    %s29 = scalar_lea.vmem %s0, 11
    %v30 = vld [vmem:[%s29] sm:$0x1]
    %31 = vrot.lane.b32.xlu0 %v30, 88
    %v32 = vpop.permute.xlu0 %31
    %vm33 = vcmask 786112
    %34 = vst.msk [vmem:[#allocation0] sm:$0x1] %vm33, %v32
    %s35 = scalar_lea.vmem %s0, 10
    %v36 = vld [vmem:[%s35] sm:$0x1]
    %37 = vrot.lane.b32.xlu0 %v36, 80
    %v38 = vpop.permute.xlu0 %37
    %vm39 = vcmask 720512
    %40 = vst.msk [vmem:[#allocation0] sm:$0x1] %vm39, %v38
    %s41 = scalar_lea.vmem %s0, 9
    %v42 = vld [vmem:[%s41] sm:$0x1]
    %43 = vrot.lane.b32.xlu0 %v42, 72
    %v44 = vpop.permute.xlu0 %43
    %vm45 = vcmask 654912
    %46 = vst.msk [vmem:[#allocation0] sm:$0x1] %vm45, %v44
    %s47 = scalar_lea.vmem %s0, 8
    %v48 = vld [vmem:[%s47] sm:$0x1]
    %49 = vrot.lane.b32.xlu0 %v48, 64
    %v50 = vpop.permute.xlu0 %49
    %vm51 = vcmask 589312
    %52 = vst.msk [vmem:[#allocation0] sm:$0x1] %vm51, %v50
    %s53 = scalar_lea.vmem %s0, 7
    %v54 = vld [vmem:[%s53] sm:$0x1]
    %55 = vrot.lane.b32.xlu0 %v54, 56
    %v56 = vpop.permute.xlu0 %55
    %vm57 = vcmask 523712
    %58 = vst.msk [vmem:[#allocation0] sm:$0x1] %vm57, %v56
    %s59 = scalar_lea.vmem %s0, 6
    %v60 = vld [vmem:[%s59] sm:$0x1]
    %61 = vrot.lane.b32.xlu0 %v60, 48
    %v62 = vpop.permute.xlu0 %61
    %vm63 = vcmask 458112
    %64 = vst.msk [vmem:[#allocation0] sm:$0x1] %vm63, %v62
    %s65 = scalar_lea.vmem %s0, 5
    %v66 = vld [vmem:[%s65] sm:$0x1]
    %67 = vrot.lane.b32.xlu0 %v66, 40
    %v68 = vpop.permute.xlu0 %67
    %vm69 = vcmask 392512
    %70 = vst.msk [vmem:[#allocation0] sm:$0x1] %vm69, %v68
    %s71 = scalar_lea.vmem %s0, 4
    %v72 = vld [vmem:[%s71] sm:$0x1]
    %73 = vrot.lane.b32.xlu0 %v72, 32
    %v74 = vpop.permute.xlu0 %73
    %vm75 = vcmask 326912
    %76 = vst.msk [vmem:[#allocation0] sm:$0x1] %vm75, %v74
    %s77 = scalar_lea.vmem %s0, 3
    %v78 = vld [vmem:[%s77] sm:$0x1]
    %79 = vrot.lane.b32.xlu0 %v78, 24
    %v80 = vpop.permute.xlu0 %79
    %vm81 = vcmask 261312
    %82 = vst.msk [vmem:[#allocation0] sm:$0x1] %vm81, %v80
    %s83 = scalar_lea.vmem %s0, 2
    %v84 = vld [vmem:[%s83] sm:$0x1]
    %85 = vrot.lane.b32.xlu0 %v84, 16
    %v86 = vpop.permute.xlu0 %85
    %vm87 = vcmask 195712
    %88 = vst.msk [vmem:[#allocation0] sm:$0x1] %vm87, %v86
    %s89 = scalar_lea.vmem %s0, 1
    %v90 = vld [vmem:[%s89] sm:$0x1]
    %91 = vrot.lane.b32.xlu0 %v90, 8
    %v92 = vpop.permute.xlu0 %91
    %vm93 = vcmask 130112
    %94 = vst.msk [vmem:[#allocation0] sm:$0x1] %vm93, %v92
    %s96 = ssub.s32 2, 1
    %v97 = vld [vmem:[#allocation0] sm:%s96]
    %s99 = ssub.s32 2, 1
    %100 = vst [vmem:[%s1] sm:%s99] %v97

// kernel: basic_block.1
$region0: #{basic_block.1}
  #allocation0 [shape = 'u32[]', space=smem, size = 0x4, offset = 0x4, fixed_abs, tag = 'smem constant byte address 0x4 - core index']
  #allocation1 [shape = 'u32[72,128]{1,0:T(1,128)}', space=vmem, size = 0x9000, scoped, tag = 'internal scratch']
  %s0 = inlined_call_operand.vmem [shape: f32[32,128], index: 0, kind: input, shape index: {}, may-alias: {0,5}]
  %s1 = inlined_call_operand.vmem [shape: bf16[384,128], index: 1, kind: input, shape index: {}]
  %s2 = inlined_call_operand.vmem [shape: bf16[384,128], index: 2, kind: input, shape index: {}]
  %s3 = inlined_call_operand.vmem [shape: f32[128,128], index: 3, kind: input, shape index: {}]
  %s4 = inlined_call_operand.vmem [shape: f32[8,128], index: 4, kind: input, shape index: {}]
  %s5 = inlined_call_operand.vmem [shape: f32[32,128], index: 5, kind: output, shape index: {}, may-alias: {0,5}]
  %s6 = sld [smem:[#allocation0]]
  $region30: #{basic_block.1} parent=0
    _
  %s8 = ssub.s32 1, %s6
  %s9 = scalar_select 0, %s8, %s6
  // Predicated region
  $region2: #{basic_block.1} parent=0 // pred_check
    _
  $region3: #{basic_block.1} parent=0 // pred_check_branch
    %11 = sbr.rel (0) target = $region5
  $region4: #{basic_block.1} parent=0 // pred_region
    _
  $region5: #{basic_block.1} parent=0 // pred_fallthru
    _
  // Predicated region
  $region6: #{basic_block.1} parent=0 // pred_check
    _
  $region7: #{basic_block.1} parent=0 // pred_check_branch
    %13 = sbr.rel (0) target = $region9
  $region8: #{basic_block.1} parent=0 // pred_region
    _
  $region9: #{basic_block.1} parent=0 // pred_fallthru
    _
  // Predicated region
  $region10: #{basic_block.1} parent=0 // pred_check
    _
  $region11: #{basic_block.1} parent=0 // pred_check_branch
    %15 = sbr.rel (0) target = $region13
  $region12: #{basic_block.1} parent=0 // pred_region
    _
  $region13: #{basic_block.1} parent=0 // pred_fallthru
    _
  // Predicated region
  $region14: #{basic_block.1} parent=0 // pred_check
    _
  $region15: #{basic_block.1} parent=0 // pred_check_branch
    %17 = sbr.rel (0) target = $region17
  $region16: #{basic_block.1} parent=0 // pred_region
    _
  $region17: #{basic_block.1} parent=0 // pred_fallthru
    _
  // Predicated region
  $region18: #{basic_block.1} parent=0 // pred_check
    _
  $region19: #{basic_block.1} parent=0 // pred_check_branch
    %19 = sbr.rel (0) target = $region21
  $region20: #{basic_block.1} parent=0 // pred_region
    _
  $region21: #{basic_block.1} parent=0 // pred_fallthru
    _
  %v21 = vld [vmem:[%s0] sm:$0xff]
  %v22 = vld [vmem:[%s0 + $0x8] sm:$0xff]
  %v23 = vld [vmem:[%s0 + $0x10] sm:$0xff]
  %v24 = vld [vmem:[%s0 + $0x18] sm:$0xff]
  %v25 = vlaneseq
  %v26 = vshrl.u32 %v25, 7
  %v27 = vadd.s32 %v26, 8
  %v28 = vadd.s32 %v26, 16
  %v29 = vadd.s32 %v26, 24
  %vm30 = vcmp.lt.s32.totalorder %v26, 0
  %v31 = vsub.s32 0, %v26
  %v32 = vsel %vm30, %v31, %v26
  %v33 = vshrl.u32 %v32, 4
  %v34 = vand.u32 %v32, 15
  %v35 = vsub.s32 0, %v34
  %v36 = vsel %vm30, %v35, %v34
  %vm37 = vcmp.lt.s32.totalorder %v27, 0
  %v38 = vsub.s32 0, %v27
  %v39 = vsel %vm37, %v38, %v27
  %v40 = vshrl.u32 %v39, 4
  %v41 = vand.u32 %v39, 15
  %v42 = vsub.s32 0, %v41
  %v43 = vsel %vm37, %v42, %v41
  %vm44 = vcmp.lt.s32.totalorder %v28, 0
  %v45 = vsub.s32 0, %v28
  %v46 = vsel %vm44, %v45, %v28
  %v47 = vshrl.u32 %v46, 4
  %v48 = vand.u32 %v46, 15
  %v49 = vsub.s32 0, %v48
  %v50 = vsel %vm44, %v49, %v48
  %vm51 = vcmp.lt.s32.totalorder %v29, 0
  %v52 = vsub.s32 0, %v29
  %v53 = vsel %vm51, %v52, %v29
  %v54 = vshrl.u32 %v53, 4
  %v55 = vand.u32 %v53, 15
  %v56 = vsub.s32 0, %v55
  %v57 = vsel %vm51, %v56, %v55
  %vm58 = vcmp.ne.s32.totalorder %v36, 0
  %vm59 = vcmp.ne.s32.totalorder %v43, 0
  %vm60 = vcmp.ne.s32.totalorder %v50, 0
  %vm61 = vcmp.ne.s32.totalorder %v57, 0
  %vm62 = vcmp.lt.s32.totalorder %v36, 0
  %vm63 = vcmp.lt.s32.totalorder %v43, 0
  %vm64 = vcmp.lt.s32.totalorder %v50, 0
  %vm65 = vcmp.lt.s32.totalorder %v57, 0
  %vm66 = vmand %vm62, %vm58
  %vm67 = vmand %vm63, %vm59
  %vm68 = vmand %vm64, %vm60
  %vm69 = vmand %vm65, %vm61
  %v70 = vadd.s32 %v36, 16
  %v71 = vadd.s32 %v43, 16
  %v72 = vadd.s32 %v50, 16
  %v73 = vadd.s32 %v57, 16
  %v74 = vsel %vm66, %v70, %v36
  %v75 = vsel %vm67, %v71, %v43
  %v76 = vsel %vm68, %v72, %v50
  %v77 = vsel %vm69, %v73, %v57
  %vm78 = vcmp.ge.s32.totalorder %v74, 1
  %vm79 = vcmp.ge.s32.totalorder %v75, 1
  %vm80 = vcmp.ge.s32.totalorder %v76, 1
  %vm81 = vcmp.ge.s32.totalorder %v77, 1
  %vm82 = vcmp.le.s32.totalorder %v74, 14
  %vm83 = vcmp.le.s32.totalorder %v75, 14
  %vm84 = vcmp.le.s32.totalorder %v76, 14
  %vm85 = vcmp.le.s32.totalorder %v77, 14
  %v86 = vld [vmem:[%s4] sm:$0xff]
  %v87 = vmax.f32 %v21, -1.0
  %v88 = vmax.f32 %v22, -1.0
  %v89 = vmax.f32 %v23, -1.0
  %v90 = vmax.f32 %v24, -1.0
  %v91 = vmin.f32 %v87, 1.0
  %v92 = vmin.f32 %v88, 1.0
  %v93 = vmin.f32 %v89, 1.0
  %v94 = vmin.f32 %v90, 1.0
  %v95 = vpack.c.bf16 %v91, %v91
  %v96 = vpack.c.bf16 %v92, %v92
  %v97 = vpack.c.bf16 %v93, %v93
  %v98 = vpack.c.bf16 %v94, %v94
  %v99 = vrot.slane %v91, 7
  %v100 = vrot.slane %v92, 7
  %v101 = vrot.slane %v93, 7
  %v102 = vrot.slane %v94, 7
  %vm103 = vcmp.lt.s32.totalorder %v26, 1
  %v104 = vsel %vm103, %v101, %v102
  %v105 = vsel %vm103, %v100, %v101
  %v106 = vsel %vm103, %v99, %v100
  %v107 = vsel %vm103, %v102, %v99
  %v108 = vpack.c.bf16 %v107, %v107
  %v109 = vpack.c.bf16 %v106, %v106
  %v110 = vpack.c.bf16 %v105, %v105
  %v111 = vpack.c.bf16 %v104, %v104
  %v112 = vsel %vm78, 1, 0
  %v113 = vsel %vm79, 1, 0
  %v114 = vsel %vm80, 1, 0
  %v115 = vsel %vm81, 1, 0
  %vm116 = vcmp.eq.s32.totalorder %v112, 1
  %vm117 = vcmp.eq.s32.totalorder %v113, 1
  %vm118 = vcmp.eq.s32.totalorder %v114, 1
  %vm119 = vcmp.eq.s32.totalorder %v115, 1
  %vm120 = vmpackc.low %vm116, %vm116
  %vm121 = vmpackc.low %vm117, %vm117
  %vm122 = vmpackc.low %vm118, %vm118
  %vm123 = vmpackc.low %vm119, %vm119
  %v124 = vsel %vm120, %v108, 0
  %v125 = vsel %vm121, %v109, 0
  %v126 = vsel %vm122, %v110, 0
  %v127 = vsel %vm123, %v111, 0
  %v128 = vrot.slane %v91, 1
  %v129 = vrot.slane %v92, 1
  %v130 = vrot.slane %v93, 1
  %v131 = vrot.slane %v94, 1
  %vm132 = vcmp.lt.s32.totalorder %v26, 7
  %v133 = vsel %vm132, %v130, %v131
  %v134 = vsel %vm132, %v129, %v130
  %v135 = vsel %vm132, %v128, %v129
  %v136 = vsel %vm132, %v131, %v128
  %v137 = vpack.c.bf16 %v135, %v135
  %v138 = vpack.c.bf16 %v134, %v134
  %v139 = vpack.c.bf16 %v133, %v133
  %v140 = vpack.c.bf16 %v136, %v136
  %v141 = vsel %vm82, 1, 0
  %v142 = vsel %vm83, 1, 0
  %v143 = vsel %vm84, 1, 0
  %v144 = vsel %vm85, 1, 0
  %vm145 = vcmp.eq.s32.totalorder %v141, 1
  %vm146 = vcmp.eq.s32.totalorder %v142, 1
  %vm147 = vcmp.eq.s32.totalorder %v143, 1
  %vm148 = vcmp.eq.s32.totalorder %v144, 1
  %vm149 = vmpackc.low %vm145, %vm145
  %vm150 = vmpackc.low %vm146, %vm146
  %vm151 = vmpackc.low %vm147, %vm147
  %vm152 = vmpackc.low %vm148, %vm148
  %v153 = vsel %vm149, %v137, 0
  %v154 = vsel %vm150, %v138, 0
  %v155 = vsel %vm151, %v139, 0
  %v156 = vsel %vm152, %v140, 0
  %v161 = vunpack.c.l.b16 %v95
  %v162 = vunpack.c.l.b16 %v96
  %v163 = vunpack.c.l.b16 %v97
  %v164 = vunpack.c.l.b16 %v98
  %v165 = vpack.c.b16 %v162, %v161
  %v166 = vpack.c.b16 %v164, %v163
  %v173 = vunpack.c.l.b16 %v124
  %v174 = vunpack.c.l.b16 %v125
  %v175 = vunpack.c.l.b16 %v126
  %v176 = vunpack.c.l.b16 %v127
  %v177 = vpack.c.b16 %v174, %v173
  %v178 = vpack.c.b16 %v176, %v175
  %v185 = vunpack.c.l.b16 %v153
  %v186 = vunpack.c.l.b16 %v154
  %v187 = vunpack.c.l.b16 %v155
  %v188 = vunpack.c.l.b16 %v156
  %v189 = vpack.c.b16 %v186, %v185
  %v190 = vpack.c.b16 %v188, %v187
  %v193 = vld [vmem:[%s1] sm:$0xf]
  %v194 = vld [vmem:[%s1 + $0x4] sm:$0xf]
  %v195 = vld [vmem:[%s1 + $0x8] sm:$0xf]
  %v196 = vld [vmem:[%s1 + $0xc] sm:$0xf]
  %v197 = vld [vmem:[%s1 + $0x10] sm:$0xf]
  %v198 = vld [vmem:[%s1 + $0x14] sm:$0xf]
  %v199 = vld [vmem:[%s1 + $0x18] sm:$0xf]
  %v200 = vld [vmem:[%s1 + $0x1c] sm:$0xf]
  %v201 = vld [vmem:[%s1 + $0x20] sm:$0xf]
  %v202 = vld [vmem:[%s1 + $0x24] sm:$0xf]
  %v203 = vld [vmem:[%s1 + $0x28] sm:$0xf]
  %v204 = vld [vmem:[%s1 + $0x2c] sm:$0xf]
  %v205 = vld [vmem:[%s1 + $0x30] sm:$0xf]
  %v206 = vld [vmem:[%s1 + $0x34] sm:$0xf]
  %v207 = vld [vmem:[%s1 + $0x38] sm:$0xf]
  %v208 = vld [vmem:[%s1 + $0x3c] sm:$0xf]
  %v209 = vld [vmem:[%s1 + $0x40] sm:$0xf]
  %v210 = vld [vmem:[%s1 + $0x44] sm:$0xf]
  %v211 = vld [vmem:[%s1 + $0x48] sm:$0xf]
  %v212 = vld [vmem:[%s1 + $0x4c] sm:$0xf]
  %v213 = vld [vmem:[%s1 + $0x50] sm:$0xf]
  %v214 = vld [vmem:[%s1 + $0x54] sm:$0xf]
  %v215 = vld [vmem:[%s1 + $0x58] sm:$0xf]
  %v216 = vld [vmem:[%s1 + $0x5c] sm:$0xf]
  %v217 = vld [vmem:[%s1 + $0x60] sm:$0xf]
  %v218 = vld [vmem:[%s1 + $0x64] sm:$0xf]
  %v219 = vld [vmem:[%s1 + $0x68] sm:$0xf]
  %v220 = vld [vmem:[%s1 + $0x6c] sm:$0xf]
  %v221 = vld [vmem:[%s1 + $0x70] sm:$0xf]
  %v222 = vld [vmem:[%s1 + $0x74] sm:$0xf]
  %v223 = vld [vmem:[%s1 + $0x78] sm:$0xf]
  %v224 = vld [vmem:[%s1 + $0x7c] sm:$0xf]
  %v225 = vld [vmem:[%s1 + $0x80] sm:$0xf]
  %v226 = vld [vmem:[%s1 + $0x84] sm:$0xf]
  %v227 = vld [vmem:[%s1 + $0x88] sm:$0xf]
  %v228 = vld [vmem:[%s1 + $0x8c] sm:$0xf]
  %v229 = vld [vmem:[%s1 + $0x90] sm:$0xf]
  %v230 = vld [vmem:[%s1 + $0x94] sm:$0xf]
  %v231 = vld [vmem:[%s1 + $0x98] sm:$0xf]
  %v232 = vld [vmem:[%s1 + $0x9c] sm:$0xf]
  %v233 = vld [vmem:[%s1 + $0xa0] sm:$0xf]
  %v234 = vld [vmem:[%s1 + $0xa4] sm:$0xf]
  %v235 = vld [vmem:[%s1 + $0xa8] sm:$0xf]
  %v236 = vld [vmem:[%s1 + $0xac] sm:$0xf]
  %v237 = vld [vmem:[%s1 + $0xb0] sm:$0xf]
  %v238 = vld [vmem:[%s1 + $0xb4] sm:$0xf]
  %v239 = vld [vmem:[%s1 + $0xb8] sm:$0xf]
  %v240 = vld [vmem:[%s1 + $0xbc] sm:$0xf]
  %v289 = vunpack.c.l.b16 %v193
  %v290 = vunpack.c.l.b16 %v194
  %v291 = vunpack.c.l.b16 %v195
  %v292 = vunpack.c.l.b16 %v196
  %v293 = vunpack.c.l.b16 %v197
  %v294 = vunpack.c.l.b16 %v198
  %v295 = vunpack.c.l.b16 %v199
  %v296 = vunpack.c.l.b16 %v200
  %v297 = vunpack.c.l.b16 %v201
  %v298 = vunpack.c.l.b16 %v202
  %v299 = vunpack.c.l.b16 %v203
  %v300 = vunpack.c.l.b16 %v204
  %v301 = vunpack.c.l.b16 %v205
  %v302 = vunpack.c.l.b16 %v206
  %v303 = vunpack.c.l.b16 %v207
  %v304 = vunpack.c.l.b16 %v208
  %v305 = vunpack.c.l.b16 %v209
  %v306 = vunpack.c.l.b16 %v210
  %v307 = vunpack.c.l.b16 %v211
  %v308 = vunpack.c.l.b16 %v212
  %v309 = vunpack.c.l.b16 %v213
  %v310 = vunpack.c.l.b16 %v214
  %v311 = vunpack.c.l.b16 %v215
  %v312 = vunpack.c.l.b16 %v216
  %v313 = vunpack.c.l.b16 %v217
  %v314 = vunpack.c.l.b16 %v218
  %v315 = vunpack.c.l.b16 %v219
  %v316 = vunpack.c.l.b16 %v220
  %v317 = vunpack.c.l.b16 %v221
  %v318 = vunpack.c.l.b16 %v222
  %v319 = vunpack.c.l.b16 %v223
  %v320 = vunpack.c.l.b16 %v224
  %v321 = vunpack.c.l.b16 %v225
  %v322 = vunpack.c.l.b16 %v226
  %v323 = vunpack.c.l.b16 %v227
  %v324 = vunpack.c.l.b16 %v228
  %v325 = vunpack.c.l.b16 %v229
  %v326 = vunpack.c.l.b16 %v230
  %v327 = vunpack.c.l.b16 %v231
  %v328 = vunpack.c.l.b16 %v232
  %v329 = vunpack.c.l.b16 %v233
  %v330 = vunpack.c.l.b16 %v234
  %v331 = vunpack.c.l.b16 %v235
  %v332 = vunpack.c.l.b16 %v236
  %v333 = vunpack.c.l.b16 %v237
  %v334 = vunpack.c.l.b16 %v238
  %v335 = vunpack.c.l.b16 %v239
  %v336 = vunpack.c.l.b16 %v240
  %v337 = vpack.c.b16 %v290, %v289
  %v338 = vpack.c.b16 %v292, %v291
  %v339 = vpack.c.b16 %v294, %v293
  %v340 = vpack.c.b16 %v296, %v295
  %v341 = vpack.c.b16 %v298, %v297
  %v342 = vpack.c.b16 %v300, %v299
  %v343 = vpack.c.b16 %v302, %v301
  %v344 = vpack.c.b16 %v304, %v303
  %v345 = vpack.c.b16 %v306, %v305
  %v346 = vpack.c.b16 %v308, %v307
  %v347 = vpack.c.b16 %v310, %v309
  %v348 = vpack.c.b16 %v312, %v311
  %v349 = vpack.c.b16 %v314, %v313
  %v350 = vpack.c.b16 %v316, %v315
  %v351 = vpack.c.b16 %v318, %v317
  %v352 = vpack.c.b16 %v320, %v319
  %v353 = vpack.c.b16 %v322, %v321
  %v354 = vpack.c.b16 %v324, %v323
  %v355 = vpack.c.b16 %v326, %v325
  %v356 = vpack.c.b16 %v328, %v327
  %v357 = vpack.c.b16 %v330, %v329
  %v358 = vpack.c.b16 %v332, %v331
  %v359 = vpack.c.b16 %v334, %v333
  %v360 = vpack.c.b16 %v336, %v335
  %385 = vmatpush.bf16.msra.mxu0 %v344
  %386 = vmatpush.bf16.msra.mxu0 %v343
  %387 = vmatpush.bf16.msra.mxu0 %v342
  %388 = vmatpush.bf16.msra.mxu0 %v341
  %389 = vmatpush.bf16.msra.mxu0 %v340
  %390 = vmatpush.bf16.msra.mxu0 %v339
  %391 = vmatpush.bf16.msra.mxu0 %v338
  %392 = vmatpush.bf16.msra.mxu0 %v337
  %393 = vmatmul.bf16.gmra.mxu0 %v165
  %v394 = vpop.f32.mrf.mxu0
  %v395 = vadd.f32 0.0, %v394
  %v396 = vpop.f32.mrf.mxu0
  %v397 = vadd.f32 0.0, %v396
  %398 = vmatmul.bf16.gmra.mxu0 %v166
  %v399 = vpop.f32.mrf.mxu0
  %v400 = vadd.f32 0.0, %v399
  %v401 = vpop.f32.mrf.mxu0
  %v402 = vadd.f32 0.0, %v401
  %403 = vdwg.mxu0
  %404 = vmatpush.bf16.msra.mxu0 %v352
  %405 = vmatpush.bf16.msra.mxu0 %v351
  %406 = vmatpush.bf16.msra.mxu0 %v350
  %407 = vmatpush.bf16.msra.mxu0 %v349
  %408 = vmatpush.bf16.msra.mxu0 %v348
  %409 = vmatpush.bf16.msra.mxu0 %v347
  %410 = vmatpush.bf16.msra.mxu0 %v346
  %411 = vmatpush.bf16.msra.mxu0 %v345
  %412 = vmatmul.bf16.gmra.mxu0 %v177
  %v413 = vpop.f32.mrf.mxu0
  %v414 = vadd.f32 %v395, %v413
  %v415 = vpop.f32.mrf.mxu0
  %v416 = vadd.f32 %v397, %v415
  %417 = vmatmul.bf16.gmra.mxu0 %v178
  %v418 = vpop.f32.mrf.mxu0
  %v419 = vadd.f32 %v400, %v418
  %v420 = vpop.f32.mrf.mxu0
  %v421 = vadd.f32 %v402, %v420
  %422 = vdwg.mxu0
  %423 = vmatpush.bf16.msra.mxu0 %v360
  %424 = vmatpush.bf16.msra.mxu0 %v359
  %425 = vmatpush.bf16.msra.mxu0 %v358
  %426 = vmatpush.bf16.msra.mxu0 %v357
  %427 = vmatpush.bf16.msra.mxu0 %v356
  %428 = vmatpush.bf16.msra.mxu0 %v355
  %429 = vmatpush.bf16.msra.mxu0 %v354
  %430 = vmatpush.bf16.msra.mxu0 %v353
  %431 = vmatmul.bf16.gmra.mxu0 %v189
  %v432 = vpop.f32.mrf.mxu0
  %v433 = vadd.f32 %v414, %v432
  %v434 = vpop.f32.mrf.mxu0
  %v435 = vadd.f32 %v416, %v434
  %436 = vmatmul.bf16.gmra.mxu0 %v190
  %v437 = vpop.f32.mrf.mxu0
  %v438 = vadd.f32 %v419, %v437
  %v439 = vpop.f32.mrf.mxu0
  %v440 = vadd.f32 %v421, %v439
  %441 = vdwg.mxu0
  %v442 = vadd.f32 %v433, %v435
  %v443 = vadd.f32 %v442, %v438
  %v444 = vadd.f32 %v443, %v440
  %v445 = vrot.slane %v444, 4
  %v446 = vadd.f32 %v444, %v445
  %v447 = vrot.slane %v446, 2
  %v448 = vadd.f32 %v446, %v447
  %v449 = vrot.slane %v448, 1
  %v450 = vadd.f32 %v448, %v449
  %v451 = vmul.f32 %v433, %v433
  %v452 = vmul.f32 %v435, %v435
  %v453 = vmul.f32 %v438, %v438
  %v454 = vmul.f32 %v440, %v440
  %v455 = vadd.f32 %v451, %v452
  %v456 = vadd.f32 %v455, %v453
  %v457 = vadd.f32 %v456, %v454
  %v458 = vrot.slane %v457, 4
  %v459 = vadd.f32 %v457, %v458
  %v460 = vrot.slane %v459, 2
  %v461 = vadd.f32 %v459, %v460
  %v462 = vrot.slane %v461, 1
  %v463 = vadd.f32 %v461, %v462
  %vm464 = vcmask 1040384
  %v465 = vsel %vm464, %v450, %v463
  %vm466 = vcmask 1041408
  %v467 = vsel %vm466, %v465, 0.0
  %v468 = vld [vmem:[%s3] sm:$0xff]
  %v469 = vld [vmem:[%s3 + $0x8] sm:$0xff]
  %v470 = vld [vmem:[%s3 + $0x10] sm:$0xff]
  %v471 = vld [vmem:[%s3 + $0x18] sm:$0xff]
  %v472 = vld [vmem:[%s3 + $0x20] sm:$0xff]
  %v473 = vld [vmem:[%s3 + $0x28] sm:$0xff]
  %v474 = vld [vmem:[%s3 + $0x30] sm:$0xff]
  %v475 = vld [vmem:[%s3 + $0x38] sm:$0xff]
  %v476 = vld [vmem:[%s3 + $0x40] sm:$0xff]
  %v477 = vld [vmem:[%s3 + $0x48] sm:$0xff]
  %v478 = vld [vmem:[%s3 + $0x50] sm:$0xff]
  %v479 = vld [vmem:[%s3 + $0x58] sm:$0xff]
  %v480 = vld [vmem:[%s3 + $0x60] sm:$0xff]
  %v481 = vld [vmem:[%s3 + $0x68] sm:$0xff]
  %v482 = vld [vmem:[%s3 + $0x70] sm:$0xff]
  %v483 = vld [vmem:[%s3 + $0x78] sm:$0xff]
  %484 = vmatpush.msra.mxu0 %v483
  %485 = vmatpush.msra.mxu0 %v482
  %486 = vmatpush.msra.mxu0 %v481
  %487 = vmatpush.msra.mxu0 %v480
  %488 = vmatpush.msra.mxu0 %v479
  %489 = vmatpush.msra.mxu0 %v478
  %490 = vmatpush.msra.mxu0 %v477
  %491 = vmatpush.msra.mxu0 %v476
  %492 = vmatpush.msra.mxu0 %v475
  %493 = vmatpush.msra.mxu0 %v474
  %494 = vmatpush.msra.mxu0 %v473
  %495 = vmatpush.msra.mxu0 %v472
  %496 = vmatpush.msra.mxu0 %v471
  %497 = vmatpush.msra.mxu0 %v470
  %498 = vmatpush.msra.mxu0 %v469
  %499 = vmatpush.msra.mxu0 %v468
  %500 = vmatmul.f32.gmra.mxu0 %v467
  %v501 = vpop.f32.mrf.mxu0
  %v502 = vadd.f32 0.0, %v501
  %503 = vdwg.mxu0
  %v504 = vmul.f32 %v502, %v502
  %v506 = vrot.slane %v504, 7
  %v508 = vsub.f32 %v502, %v506
  %v509 = vadd.f32 %v508, 1e-05
  %v510 = vrsqrt.pop %v509
  %v511 = vmul.f32 %v510, %v509
  %v512 = vmul.f32 %v511, %v510
  %v513 = vmul.f32 0.5, %v512
  %v514 = vsub.f32 1.5, %v513
  %v515 = vmul.f32 %v510, %v514
  %vm516 = vweird.f32 %v509
  %vm517 = vweird.f32 %v510
  %vm518 = vmor %vm516, %vm517
  %v519 = vsel %vm518, %v510, %v515
  %v521 = vrot.slane %v519, 1
  %v523 = vmul.f32 %v86, %v521
  %v524 = vmul.f32 %v502, %v523
  %v526 = vrot.slane %v524, 7
  %v528 = vsub.f32 %v86, %v526
  %v529 = vperm.slane %v523, 0
  %v530 = vmul.f32 %v433, %v529
  %v531 = vmul.f32 %v435, %v529
  %v532 = vmul.f32 %v438, %v529
  %v533 = vmul.f32 %v440, %v529
  %v534 = vperm.slane %v528, 1
  %v535 = vadd.f32 %v530, %v534
  %v536 = vadd.f32 %v531, %v534
  %v537 = vadd.f32 %v532, %v534
  %v538 = vadd.f32 %v533, %v534
  %v539 = vadd.f32 %v21, %v535
  %v540 = vadd.f32 %v22, %v536
  %v541 = vadd.f32 %v23, %v537
  %v542 = vadd.f32 %v24, %v538
  %v543 = vmax.f32 %v539, -1.0
  %v544 = vmax.f32 %v540, -1.0
  %v545 = vmax.f32 %v541, -1.0
  %v546 = vmax.f32 %v542, -1.0
  %v547 = vmin.f32 %v543, 1.0
  %v548 = vmin.f32 %v544, 1.0
  %v549 = vmin.f32 %v545, 1.0
  %v550 = vmin.f32 %v546, 1.0
  %v551 = vpack.c.bf16 %v547, %v547
  %v552 = vpack.c.bf16 %v548, %v548
  %v553 = vpack.c.bf16 %v549, %v549
  %v554 = vpack.c.bf16 %v550, %v550
  %v555 = vrot.slane %v547, 7
  %v556 = vrot.slane %v548, 7
  %v557 = vrot.slane %v549, 7
  %v558 = vrot.slane %v550, 7
  %v559 = vsel %vm103, %v557, %v558
  %v560 = vsel %vm103, %v556, %v557
  %v561 = vsel %vm103, %v555, %v556
  %v562 = vsel %vm103, %v558, %v555
  %v563 = vpack.c.bf16 %v562, %v562
  %v564 = vpack.c.bf16 %v561, %v561
  %v565 = vpack.c.bf16 %v560, %v560
  %v566 = vpack.c.bf16 %v559, %v559
  %v567 = vsel %vm120, %v563, 0
  %v568 = vsel %vm121, %v564, 0
  %v569 = vsel %vm122, %v565, 0
  %v570 = vsel %vm123, %v566, 0
  %v571 = vrot.slane %v547, 1
  %v572 = vrot.slane %v548, 1
  %v573 = vrot.slane %v549, 1
  %v574 = vrot.slane %v550, 1
  %v575 = vsel %vm132, %v573, %v574
  %v576 = vsel %vm132, %v572, %v573
  %v577 = vsel %vm132, %v571, %v572
  %v578 = vsel %vm132, %v574, %v571
  %v579 = vpack.c.bf16 %v577, %v577
  %v580 = vpack.c.bf16 %v576, %v576
  %v581 = vpack.c.bf16 %v575, %v575
  %v582 = vpack.c.bf16 %v578, %v578
  %v583 = vsel %vm149, %v579, 0
  %v584 = vsel %vm150, %v580, 0
  %v585 = vsel %vm151, %v581, 0
  %v586 = vsel %vm152, %v582, 0
  %v591 = vunpack.c.l.b16 %v551
  %v592 = vunpack.c.l.b16 %v552
  %v593 = vunpack.c.l.b16 %v553
  %v594 = vunpack.c.l.b16 %v554
  %v595 = vpack.c.b16 %v592, %v591
  %v596 = vpack.c.b16 %v594, %v593
  %v603 = vunpack.c.l.b16 %v567
  %v604 = vunpack.c.l.b16 %v568
  %v605 = vunpack.c.l.b16 %v569
  %v606 = vunpack.c.l.b16 %v570
  %v607 = vpack.c.b16 %v604, %v603
  %v608 = vpack.c.b16 %v606, %v605
  %v615 = vunpack.c.l.b16 %v583
  %v616 = vunpack.c.l.b16 %v584
  %v617 = vunpack.c.l.b16 %v585
  %v618 = vunpack.c.l.b16 %v586
  %v619 = vpack.c.b16 %v616, %v615
  %v620 = vpack.c.b16 %v618, %v617
  %v623 = vld [vmem:[%s2] sm:$0xf]
  %v624 = vld [vmem:[%s2 + $0x4] sm:$0xf]
  %v625 = vld [vmem:[%s2 + $0x8] sm:$0xf]
  %v626 = vld [vmem:[%s2 + $0xc] sm:$0xf]
  %v627 = vld [vmem:[%s2 + $0x10] sm:$0xf]
  %v628 = vld [vmem:[%s2 + $0x14] sm:$0xf]
  %v629 = vld [vmem:[%s2 + $0x18] sm:$0xf]
  %v630 = vld [vmem:[%s2 + $0x1c] sm:$0xf]
  %v631 = vld [vmem:[%s2 + $0x20] sm:$0xf]
  %v632 = vld [vmem:[%s2 + $0x24] sm:$0xf]
  %v633 = vld [vmem:[%s2 + $0x28] sm:$0xf]
  %v634 = vld [vmem:[%s2 + $0x2c] sm:$0xf]
  %v635 = vld [vmem:[%s2 + $0x30] sm:$0xf]
  %v636 = vld [vmem:[%s2 + $0x34] sm:$0xf]
  %v637 = vld [vmem:[%s2 + $0x38] sm:$0xf]
  %v638 = vld [vmem:[%s2 + $0x3c] sm:$0xf]
  %v639 = vld [vmem:[%s2 + $0x40] sm:$0xf]
  %v640 = vld [vmem:[%s2 + $0x44] sm:$0xf]
  %v641 = vld [vmem:[%s2 + $0x48] sm:$0xf]
  %v642 = vld [vmem:[%s2 + $0x4c] sm:$0xf]
  %v643 = vld [vmem:[%s2 + $0x50] sm:$0xf]
  %v644 = vld [vmem:[%s2 + $0x54] sm:$0xf]
  %v645 = vld [vmem:[%s2 + $0x58] sm:$0xf]
  %v646 = vld [vmem:[%s2 + $0x5c] sm:$0xf]
  %v647 = vld [vmem:[%s2 + $0x60] sm:$0xf]
  %v648 = vld [vmem:[%s2 + $0x64] sm:$0xf]
  %v649 = vld [vmem:[%s2 + $0x68] sm:$0xf]
  %v650 = vld [vmem:[%s2 + $0x6c] sm:$0xf]
  %v651 = vld [vmem:[%s2 + $0x70] sm:$0xf]
  %v652 = vld [vmem:[%s2 + $0x74] sm:$0xf]
  %v653 = vld [vmem:[%s2 + $0x78] sm:$0xf]
  %v654 = vld [vmem:[%s2 + $0x7c] sm:$0xf]
  %v655 = vld [vmem:[%s2 + $0x80] sm:$0xf]
  %v656 = vld [vmem:[%s2 + $0x84] sm:$0xf]
  %v657 = vld [vmem:[%s2 + $0x88] sm:$0xf]
  %v658 = vld [vmem:[%s2 + $0x8c] sm:$0xf]
  %v659 = vld [vmem:[%s2 + $0x90] sm:$0xf]
  %v660 = vld [vmem:[%s2 + $0x94] sm:$0xf]
  %v661 = vld [vmem:[%s2 + $0x98] sm:$0xf]
  %v662 = vld [vmem:[%s2 + $0x9c] sm:$0xf]
  %v663 = vld [vmem:[%s2 + $0xa0] sm:$0xf]
  %v664 = vld [vmem:[%s2 + $0xa4] sm:$0xf]
  %v665 = vld [vmem:[%s2 + $0xa8] sm:$0xf]
  %v666 = vld [vmem:[%s2 + $0xac] sm:$0xf]
  %v667 = vld [vmem:[%s2 + $0xb0] sm:$0xf]
  %v668 = vld [vmem:[%s2 + $0xb4] sm:$0xf]
  %v669 = vld [vmem:[%s2 + $0xb8] sm:$0xf]
  %v670 = vld [vmem:[%s2 + $0xbc] sm:$0xf]
  %v719 = vunpack.c.l.b16 %v623
  %v720 = vunpack.c.l.b16 %v624
  %v721 = vunpack.c.l.b16 %v625
  %v722 = vunpack.c.l.b16 %v626
  %v723 = vunpack.c.l.b16 %v627
  %v724 = vunpack.c.l.b16 %v628
  %v725 = vunpack.c.l.b16 %v629
  %v726 = vunpack.c.l.b16 %v630
  %v727 = vunpack.c.l.b16 %v631
  %v728 = vunpack.c.l.b16 %v632
  %v729 = vunpack.c.l.b16 %v633
  %v730 = vunpack.c.l.b16 %v634
  %v731 = vunpack.c.l.b16 %v635
  %v732 = vunpack.c.l.b16 %v636
  %v733 = vunpack.c.l.b16 %v637
  %v734 = vunpack.c.l.b16 %v638
  %v735 = vunpack.c.l.b16 %v639
  %v736 = vunpack.c.l.b16 %v640
  %v737 = vunpack.c.l.b16 %v641
  %v738 = vunpack.c.l.b16 %v642
  %v739 = vunpack.c.l.b16 %v643
  %v740 = vunpack.c.l.b16 %v644
  %v741 = vunpack.c.l.b16 %v645
  %v742 = vunpack.c.l.b16 %v646
  %v743 = vunpack.c.l.b16 %v647
  %v744 = vunpack.c.l.b16 %v648
  %v745 = vunpack.c.l.b16 %v649
  %v746 = vunpack.c.l.b16 %v650
  %v747 = vunpack.c.l.b16 %v651
  %v748 = vunpack.c.l.b16 %v652
  %v749 = vunpack.c.l.b16 %v653
  %v750 = vunpack.c.l.b16 %v654
  %v751 = vunpack.c.l.b16 %v655
  %v752 = vunpack.c.l.b16 %v656
  %v753 = vunpack.c.l.b16 %v657
  %v754 = vunpack.c.l.b16 %v658
  %v755 = vunpack.c.l.b16 %v659
  %v756 = vunpack.c.l.b16 %v660
  %v757 = vunpack.c.l.b16 %v661
  %v758 = vunpack.c.l.b16 %v662
  %v759 = vunpack.c.l.b16 %v663
  %v760 = vunpack.c.l.b16 %v664
  %v761 = vunpack.c.l.b16 %v665
  %v762 = vunpack.c.l.b16 %v666
  %v763 = vunpack.c.l.b16 %v667
  %v764 = vunpack.c.l.b16 %v668
  %v765 = vunpack.c.l.b16 %v669
  %v766 = vunpack.c.l.b16 %v670
  %v767 = vpack.c.b16 %v720, %v719
  %v768 = vpack.c.b16 %v722, %v721
  %v769 = vpack.c.b16 %v724, %v723
  %v770 = vpack.c.b16 %v726, %v725
  %v771 = vpack.c.b16 %v728, %v727
  %v772 = vpack.c.b16 %v730, %v729
  %v773 = vpack.c.b16 %v732, %v731
  %v774 = vpack.c.b16 %v734, %v733
  %v775 = vpack.c.b16 %v736, %v735
  %v776 = vpack.c.b16 %v738, %v737
  %v777 = vpack.c.b16 %v740, %v739
  %v778 = vpack.c.b16 %v742, %v741
  %v779 = vpack.c.b16 %v744, %v743
  %v780 = vpack.c.b16 %v746, %v745
  %v781 = vpack.c.b16 %v748, %v747
  %v782 = vpack.c.b16 %v750, %v749
  %v783 = vpack.c.b16 %v752, %v751
  %v784 = vpack.c.b16 %v754, %v753
  %v785 = vpack.c.b16 %v756, %v755
  %v786 = vpack.c.b16 %v758, %v757
  %v787 = vpack.c.b16 %v760, %v759
  %v788 = vpack.c.b16 %v762, %v761
  %v789 = vpack.c.b16 %v764, %v763
  %v790 = vpack.c.b16 %v766, %v765
  %815 = vmatpush.bf16.msra.mxu0 %v774
  %816 = vmatpush.bf16.msra.mxu0 %v773
  %817 = vmatpush.bf16.msra.mxu0 %v772
  %818 = vmatpush.bf16.msra.mxu0 %v771
  %819 = vmatpush.bf16.msra.mxu0 %v770
  %820 = vmatpush.bf16.msra.mxu0 %v769
  %821 = vmatpush.bf16.msra.mxu0 %v768
  %822 = vmatpush.bf16.msra.mxu0 %v767
  %823 = vmatmul.bf16.gmra.mxu0 %v595
  %v824 = vpop.f32.mrf.mxu0
  %v825 = vadd.f32 0.0, %v824
  %v826 = vpop.f32.mrf.mxu0
  %v827 = vadd.f32 0.0, %v826
  %828 = vmatmul.bf16.gmra.mxu0 %v596
  %v829 = vpop.f32.mrf.mxu0
  %v830 = vadd.f32 0.0, %v829
  %v831 = vpop.f32.mrf.mxu0
  %v832 = vadd.f32 0.0, %v831
  %833 = vdwg.mxu0
  %834 = vmatpush.bf16.msra.mxu0 %v782
  %835 = vmatpush.bf16.msra.mxu0 %v781
  %836 = vmatpush.bf16.msra.mxu0 %v780
  %837 = vmatpush.bf16.msra.mxu0 %v779
  %838 = vmatpush.bf16.msra.mxu0 %v778
  %839 = vmatpush.bf16.msra.mxu0 %v777
  %840 = vmatpush.bf16.msra.mxu0 %v776
  %841 = vmatpush.bf16.msra.mxu0 %v775
  %842 = vmatmul.bf16.gmra.mxu0 %v607
  %v843 = vpop.f32.mrf.mxu0
  %v844 = vadd.f32 %v825, %v843
  %v845 = vpop.f32.mrf.mxu0
  %v846 = vadd.f32 %v827, %v845
  %847 = vmatmul.bf16.gmra.mxu0 %v608
  %v848 = vpop.f32.mrf.mxu0
  %v849 = vadd.f32 %v830, %v848
  %v850 = vpop.f32.mrf.mxu0
  %v851 = vadd.f32 %v832, %v850
  %852 = vdwg.mxu0
  %853 = vmatpush.bf16.msra.mxu0 %v790
  %854 = vmatpush.bf16.msra.mxu0 %v789
  %855 = vmatpush.bf16.msra.mxu0 %v788
  %856 = vmatpush.bf16.msra.mxu0 %v787
  %857 = vmatpush.bf16.msra.mxu0 %v786
  %858 = vmatpush.bf16.msra.mxu0 %v785
  %859 = vmatpush.bf16.msra.mxu0 %v784
  %860 = vmatpush.bf16.msra.mxu0 %v783
  %861 = vmatmul.bf16.gmra.mxu0 %v619
  %v862 = vpop.f32.mrf.mxu0
  %v863 = vadd.f32 %v844, %v862
  %v864 = vpop.f32.mrf.mxu0
  %v865 = vadd.f32 %v846, %v864
  %866 = vmatmul.bf16.gmra.mxu0 %v620
  %v867 = vpop.f32.mrf.mxu0
  %v868 = vadd.f32 %v849, %v867
  %v869 = vpop.f32.mrf.mxu0
  %v870 = vadd.f32 %v851, %v869
  %871 = vdwg.mxu0
  %v872 = vadd.f32 %v863, %v865
  %v873 = vadd.f32 %v872, %v868
  %v874 = vadd.f32 %v873, %v870
  %v875 = vrot.slane %v874, 4
  %v876 = vadd.f32 %v874, %v875
  %v877 = vrot.slane %v876, 2
  %v878 = vadd.f32 %v876, %v877
  %v879 = vrot.slane %v878, 1
  %v880 = vadd.f32 %v878, %v879
  %v881 = vmul.f32 %v863, %v863
  %v882 = vmul.f32 %v865, %v865
  %v883 = vmul.f32 %v868, %v868
  %v884 = vmul.f32 %v870, %v870
  %v885 = vadd.f32 %v881, %v882
  %v886 = vadd.f32 %v885, %v883
  %v887 = vadd.f32 %v886, %v884
  %v888 = vrot.slane %v887, 4
  %v889 = vadd.f32 %v887, %v888
  %v890 = vrot.slane %v889, 2
  %v891 = vadd.f32 %v889, %v890
  %v892 = vrot.slane %v891, 1
  %v893 = vadd.f32 %v891, %v892
  %v894 = vsel %vm464, %v880, %v893
  %v895 = vsel %vm466, %v894, 0.0
  %896 = vmatpush.msra.mxu0 %v483
  %897 = vmatpush.msra.mxu0 %v482
  %898 = vmatpush.msra.mxu0 %v481
  %899 = vmatpush.msra.mxu0 %v480
  %900 = vmatpush.msra.mxu0 %v479
  %901 = vmatpush.msra.mxu0 %v478
  %902 = vmatpush.msra.mxu0 %v477
  %903 = vmatpush.msra.mxu0 %v476
  %904 = vmatpush.msra.mxu0 %v475
  %905 = vmatpush.msra.mxu0 %v474
  %906 = vmatpush.msra.mxu0 %v473
  %907 = vmatpush.msra.mxu0 %v472
  %908 = vmatpush.msra.mxu0 %v471
  %909 = vmatpush.msra.mxu0 %v470
  %910 = vmatpush.msra.mxu0 %v469
  %911 = vmatpush.msra.mxu0 %v468
  %912 = vmatmul.f32.gmra.mxu0 %v895
  %v913 = vpop.f32.mrf.mxu0
  %v914 = vadd.f32 0.0, %v913
  %915 = vdwg.mxu0
  %v916 = vmul.f32 %v914, %v914
  %v918 = vrot.slane %v916, 7
  %v920 = vsub.f32 %v914, %v918
  %v921 = vadd.f32 %v920, 1e-05
  %v922 = vrsqrt.pop %v921
  %v923 = vmul.f32 %v922, %v921
  %v924 = vmul.f32 %v923, %v922
  %v925 = vmul.f32 0.5, %v924
  %v926 = vsub.f32 1.5, %v925
  %v927 = vmul.f32 %v922, %v926
  %vm928 = vweird.f32 %v921
  %vm929 = vweird.f32 %v922
  %vm930 = vmor %vm928, %vm929
  %v931 = vsel %vm930, %v922, %v927
  %v933 = vrot.slane %v931, 7
  %v935 = vmul.f32 %v86, %v933
  %v937 = vrot.slane %v935, 2
  %v939 = vmul.f32 %v914, %v937
  %v941 = vrot.slane %v939, 5
  %v943 = vsub.f32 %v86, %v941
  %v944 = vperm.slane %v935, 2
  %v945 = vmul.f32 %v863, %v944
  %v946 = vmul.f32 %v865, %v944
  %v947 = vmul.f32 %v868, %v944
  %v948 = vmul.f32 %v870, %v944
  %v949 = vperm.slane %v943, 3
  %v950 = vadd.f32 %v945, %v949
  %v951 = vadd.f32 %v946, %v949
  %v952 = vadd.f32 %v947, %v949
  %v953 = vadd.f32 %v948, %v949
  %v954 = vadd.f32 %v950, %v539
  %v955 = vadd.f32 %v951, %v540
  %v956 = vadd.f32 %v952, %v541
  %v957 = vadd.f32 %v953, %v542
  %958 = vst [vmem:[%s5] sm:$0xff] %v954
  %959 = vst [vmem:[%s5 + $0x8] sm:$0xff] %v955
  %960 = vst [vmem:[%s5 + $0x10] sm:$0xff] %v956
  %961 = vst [vmem:[%s5 + $0x18] sm:$0xff] %v957
  // Predicated region
  $region22: #{basic_block.1} parent=0 // pred_check
    _
  $region23: #{basic_block.1} parent=0 // pred_check_branch
    %963 = sbr.rel (0) target = $region25
  $region24: #{basic_block.1} parent=0 // pred_region
    _
  $region25: #{basic_block.1} parent=0 // pred_fallthru
    _
  // Predicated region
  $region26: #{basic_block.1} parent=0 // pred_check
    _
  $region27: #{basic_block.1} parent=0 // pred_check_branch
    %965 = sbr.rel (0) target = $region29
  $region28: #{basic_block.1} parent=0 // pred_region
    _
  $region29: #{basic_block.1} parent=0 // pred_fallthru
    _

</llo_original>
